<compile_context>
chip_gen: v5e
topology: v5e:2x2
jax: 0.10.0
libtpu: 0.0.40
codegen_flags: <defaults>
</compile_context>

<pallas_src>
import jax
import jax.numpy as jnp
from jax.experimental import pallas as pl
from jax.experimental.pallas import tpu as pltpu


def _agg_op_kernel(w_ref, n_ref, x_ref, out_ref, sum_acc, max_acc):
    """Grid = (D tiles [parallel], N tiles [arbitrary, reduction last]).

    w_ref   : SMEM (3,) f32   -> [w_sum, w_mean, w_max]
    n_ref   : SMEM (1,) i32   -> true (unpadded) number of rows
    x_ref   : VMEM (tn, td)   -> tile of the concatenated input
    out_ref : VMEM (1, td)
    sum_acc, max_acc : VMEM (1, td) f32 scratch accumulators
    """
    k = pl.program_id(1)

    @pl.when(k == 0)
    def _init():
        sum_acc[...] = jnp.zeros(sum_acc.shape, sum_acc.dtype)
        max_acc[...] = jnp.full(max_acc.shape, -jnp.inf, max_acc.dtype)

    x = x_ref[...].astype(jnp.float32)                       # (tn, td)
    tn = x.shape[0]
    n_rows = n_ref[0]

    # Mask rows that are padding (wrapper pads N up to a multiple of tn).
    row_ids = k * tn + jax.lax.broadcasted_iota(jnp.int32, x.shape, 0)
    valid = row_ids < n_rows

    sum_acc[...] += jnp.sum(jnp.where(valid, x, 0.0), axis=0, keepdims=True)
    max_acc[...] = jnp.maximum(
        max_acc[...],
        jnp.max(jnp.where(valid, x, -jnp.inf), axis=0, keepdims=True))

    @pl.when(k == pl.num_programs(1) - 1)
    def _finalize():
        s = sum_acc[...]
        mean = s * (1.0 / n_rows.astype(jnp.float32))
        out = w_ref[0] * s + w_ref[1] * mean + w_ref[2] * max_acc[...]
        out_ref[...] = out.astype(out_ref.dtype)


def _round_up(x, m):
    return ((x + m - 1) // m) * m


def _pick_feature_tile(d):
    if d % 128 != 0:
        return d                       # full-extent block for odd feature dims
    for td in (512, 256, 128):
        if d % td == 0:
            return td
    return d


def agg_op(data, weights, aggop_ablation=False):
    """Pallas implementation of Agg_Op.forward.

    data    : dict (or list) of arrays, each (n_i, D); concatenated along axis 0.
    weights : (3,) for ['sum','mean','max'], or (1,) when aggop_ablation=True.
    returns : (D,)
    """
    parts = [data[j] for j in data] if isinstance(data, dict) else list(data)
    all_cat = jnp.concatenate(parts, axis=0)
    n, d = all_cat.shape
    dtype = all_cat.dtype

    weights = jnp.asarray(weights, jnp.float32).reshape(-1)
    if aggop_ablation:
        # agg_dict == ['mean']: only the mean branch is active.
        w3 = jnp.array([0.0, 1.0, 0.0], jnp.float32) * weights[0]
    else:
        w3 = weights                   # order: [sum, mean, max]

    td = _pick_feature_tile(d)
    tn = 256 if n >= 256 else _round_up(n, 8)
    n_pad = _round_up(n, tn)
    if n_pad != n:
        all_cat = jnp.pad(all_cat, ((0, n_pad - n), (0, 0)))

    grid = (d // td, n_pad // tn)      # reduction (row) axis last

    out = pl.pallas_call(
        _agg_op_kernel,
        out_shape=jax.ShapeDtypeStruct((1, d), dtype),
        grid=grid,
        in_specs=[
            pl.BlockSpec(memory_space=pltpu.MemorySpace.SMEM),   # weights (3,)
            pl.BlockSpec(memory_space=pltpu.MemorySpace.SMEM),   # n_rows (1,)
            pl.BlockSpec((tn, td), lambda i, k: (k, i)),         # data tile
        ],
        out_specs=pl.BlockSpec((1, td), lambda i, k: (0, i)),
        scratch_shapes=[
            pltpu.VMEM((1, td), jnp.float32),                    # sum accumulator
            pltpu.VMEM((1, td), jnp.float32),                    # max accumulator
        ],
        compiler_params=pltpu.CompilerParams(
            dimension_semantics=("parallel", "arbitrary")),
    )(w3, jnp.array([n], jnp.int32), all_cat)

    return out.reshape(d)


def reference(data, weights, aggop_ablation=False):
    parts = [data[j] for j in data] if isinstance(data, dict) else list(data)
    all_cat = jnp.concatenate(parts, axis=0).astype(jnp.float32)
    ops = ['mean'] if aggop_ablation else ['sum', 'mean', 'max']
    mixed = []
    for w, op in zip(weights, ops):
        if op == 'sum':
            mixed.append(w * all_cat.sum(axis=0))
        elif op == 'mean':
            mixed.append(w * all_cat.mean(axis=0))
        elif op == 'max':
            mixed.append(w * all_cat.max(axis=0))
    return sum(mixed)


if __name__ == "__main__":
    key = jax.random.PRNGKey(0)
    k1, k2, k3, kw = jax.random.split(key, 4)

    d = 128   # lane-aligned feature dim
    # dict of node features, mimicking the module's `for j in data: ... data[j]`
    data = {
        "n0": jax.random.normal(k1, (4, d), jnp.float32),
        "n1": jax.random.normal(k2, (6, d), jnp.float32),
        "n2": jax.random.normal(k3, (6, d), jnp.float32),
    }
    # architecture weights over ['sum', 'mean', 'max']
    weights = jax.nn.softmax(jax.random.normal(kw, (3,), jnp.float32))

    out = jax.block_until_ready(agg_op(data, weights))
    ref = reference(data, weights)
    assert out.shape == (d,)
    assert jnp.allclose(out, ref, atol=1e-5, rtol=1e-5), "mismatch vs pure-JAX reference"

    # ablation path (agg_dict == ['mean'])
    out_abl = jax.block_until_ready(agg_op(data, weights[:1], aggop_ablation=True))
    ref_abl = reference(data, weights[:1], aggop_ablation=True)
    assert jnp.allclose(out_abl, ref_abl, atol=1e-5, rtol=1e-5), "mismatch (ablation)"

    print("KERNEL_OK")
</pallas_src>

<mosaic_0001>
module attributes {stable_mosaic.version = 11 : i64} {
  func.func @_agg_op_kernel(%arg0: i32, %arg1: i32, %arg2: memref<3xf32, #tpu.memory_space<smem>>, %arg3: memref<1xi32, #tpu.memory_space<smem>>, %arg4: memref<16x128xf32, #tpu.memory_space<vmem>>, %arg5: memref<1x128xf32, #tpu.memory_space<vmem>>, %arg6: memref<1x128xf32, #tpu.memory_space<vmem>>, %arg7: memref<1x128xf32, #tpu.memory_space<vmem>>) attributes {dimension_semantics = [#tpu.dimension_semantics<parallel>, #tpu.dimension_semantics<arbitrary>], iteration_bounds = array<i64: 1, 1>, scalar_prefetch = 0 : i64, scratch_operands = 2 : i64, tpu.core_type = #tpu.core_type<tc>, window_params = [{transform_indices = @transform_0, window_bounds = array<i64: 3>}, {transform_indices = @transform_1, window_bounds = array<i64: 1>}, {transform_indices = @transform_2, window_bounds = array<i64: 16, 128>}, {transform_indices = @transform_3, window_bounds = array<i64: 1, 128>}]} {
    %c0_i32 = arith.constant 0 : i32
    %0 = arith.cmpi eq, %arg1, %c0_i32 : i32
    %1 = arith.extui %0 : i1 to i32
    %c0_i32_0 = arith.constant 0 : i32
    %2 = arith.cmpi ne, %1, %c0_i32_0 : i32
    scf.if %2 {
      %cst_16 = arith.constant 0.000000e+00 : f32
      %28 = vector.broadcast %cst_16 : f32 to vector<1x128xf32>
      %c0_17 = arith.constant 0 : index
      %c0_18 = arith.constant 0 : index
      %29 = vector.load %arg6[%c0_17, %c0_18] : memref<1x128xf32, #tpu.memory_space<vmem>>, vector<1x128xf32>
      tpu.vector_store %arg6[%c0_17, %c0_18], %28 {strides = array<i32>} : memref<1x128xf32, #tpu.memory_space<vmem>>, vector<1x128xf32>,
      %cst_19 = arith.constant 0xFF800000 : f32
      %30 = vector.broadcast %cst_19 : f32 to vector<1x128xf32>
      %c0_20 = arith.constant 0 : index
      %c0_21 = arith.constant 0 : index
      %31 = vector.load %arg7[%c0_20, %c0_21] : memref<1x128xf32, #tpu.memory_space<vmem>>, vector<1x128xf32>
      tpu.vector_store %arg7[%c0_20, %c0_21], %30 {strides = array<i32>} : memref<1x128xf32, #tpu.memory_space<vmem>>, vector<1x128xf32>,
    } else {
    }
    %c0 = arith.constant 0 : index
    %c0_1 = arith.constant 0 : index
    %3 = vector.load %arg4[%c0, %c0_1] : memref<16x128xf32, #tpu.memory_space<vmem>>, vector<16x128xf32>
    %c0_2 = arith.constant 0 : index
    %4 = memref.load %arg3[%c0_2] : memref<1xi32, #tpu.memory_space<smem>>
    %c16_i32 = arith.constant 16 : i32
    %5 = arith.muli %arg1, %c16_i32 : i32
    %6 = tpu.iota {dimensions = array<i32: 0>} : vector<16x128xi32>
    %7 = vector.broadcast %5 : i32 to vector<16x128xi32>
    %8 = arith.addi %7, %6 : vector<16x128xi32>
    %9 = vector.broadcast %4 : i32 to vector<16x128xi32>
    %10 = arith.cmpi slt, %8, %9 : vector<16x128xi32>
    %c0_3 = arith.constant 0 : index
    %c0_4 = arith.constant 0 : index
    %11 = vector.load %arg6[%c0_3, %c0_4] : memref<1x128xf32, #tpu.memory_space<vmem>>, vector<1x128xf32>
    %cst = arith.constant 0.000000e+00 : f32
    %12 = vector.broadcast %cst : f32 to vector<16x128xf32>
    %13 = arith.select %10, %3, %12 : vector<16x128xi1>, vector<16x128xf32>
    %cst_5 = arith.constant dense<0.000000e+00> : vector<128xf32>
    %14 = vector.multi_reduction <add>, %13, %cst_5 [0] : vector<16x128xf32> to vector<128xf32>
    %15 = vector.shape_cast %14 : vector<128xf32> to vector<1x128xf32>
    %16 = arith.addf %11, %15 : vector<1x128xf32>
    %c0_6 = arith.constant 0 : index
    %c0_7 = arith.constant 0 : index
    %17 = vector.load %arg6[%c0_6, %c0_7] : memref<1x128xf32, #tpu.memory_space<vmem>>, vector<1x128xf32>
    tpu.vector_store %arg6[%c0_6, %c0_7], %16 {strides = array<i32>} : memref<1x128xf32, #tpu.memory_space<vmem>>, vector<1x128xf32>,
    %c0_8 = arith.constant 0 : index
    %c0_9 = arith.constant 0 : index
    %18 = vector.load %arg7[%c0_8, %c0_9] : memref<1x128xf32, #tpu.memory_space<vmem>>, vector<1x128xf32>
    %cst_10 = arith.constant 0xFF800000 : f32
    %19 = vector.broadcast %cst_10 : f32 to vector<16x128xf32>
    %20 = arith.select %10, %3, %19 : vector<16x128xi1>, vector<16x128xf32>
    %cst_11 = arith.constant dense<0xFF800000> : vector<128xf32>
    %21 = vector.multi_reduction <maximumf>, %20, %cst_11 [0] : vector<16x128xf32> to vector<128xf32>
    %22 = vector.shape_cast %21 : vector<128xf32> to vector<1x128xf32>
    %23 = arith.maximumf %18, %22 : vector<1x128xf32>
    %c0_12 = arith.constant 0 : index
    %c0_13 = arith.constant 0 : index
    %24 = vector.load %arg7[%c0_12, %c0_13] : memref<1x128xf32, #tpu.memory_space<vmem>>, vector<1x128xf32>
    tpu.vector_store %arg7[%c0_12, %c0_13], %23 {strides = array<i32>} : memref<1x128xf32, #tpu.memory_space<vmem>>, vector<1x128xf32>,
    %c0_i32_14 = arith.constant 0 : i32
    %25 = arith.cmpi eq, %arg1, %c0_i32_14 : i32
    %26 = arith.extui %25 : i1 to i32
    %c0_i32_15 = arith.constant 0 : i32
    %27 = arith.cmpi ne, %26, %c0_i32_15 : i32
    scf.if %27 {
      %c0_16 = arith.constant 0 : index
      %c0_17 = arith.constant 0 : index
      %28 = vector.load %arg6[%c0_16, %c0_17] : memref<1x128xf32, #tpu.memory_space<vmem>>, vector<1x128xf32>
      %29 = arith.sitofp %4 : i32 to f32
      %cst_18 = arith.constant 1.000000e+00 : f32
      %30 = arith.divf %cst_18, %29 : f32
      %31 = vector.broadcast %30 : f32 to vector<1x128xf32>
      %32 = arith.mulf %28, %31 : vector<1x128xf32>
      %c0_19 = arith.constant 0 : index
      %33 = memref.load %arg2[%c0_19] : memref<3xf32, #tpu.memory_space<smem>>
      %34 = vector.broadcast %33 : f32 to vector<1x128xf32>
      %35 = arith.mulf %34, %28 : vector<1x128xf32>
      %c1 = arith.constant 1 : index
      %36 = memref.load %arg2[%c1] : memref<3xf32, #tpu.memory_space<smem>>
      %37 = vector.broadcast %36 : f32 to vector<1x128xf32>
      %38 = arith.mulf %37, %32 : vector<1x128xf32>
      %39 = arith.addf %35, %38 : vector<1x128xf32>
      %c2 = arith.constant 2 : index
      %40 = memref.load %arg2[%c2] : memref<3xf32, #tpu.memory_space<smem>>
      %c0_20 = arith.constant 0 : index
      %c0_21 = arith.constant 0 : index
      %41 = vector.load %arg7[%c0_20, %c0_21] : memref<1x128xf32, #tpu.memory_space<vmem>>, vector<1x128xf32>
      %42 = vector.broadcast %40 : f32 to vector<1x128xf32>
      %43 = arith.mulf %42, %41 : vector<1x128xf32>
      %44 = arith.addf %39, %43 : vector<1x128xf32>
      %c0_22 = arith.constant 0 : index
      %c0_23 = arith.constant 0 : index
      %45 = vector.load %arg5[%c0_22, %c0_23] : memref<1x128xf32, #tpu.memory_space<vmem>>, vector<1x128xf32>
      tpu.vector_store %arg5[%c0_22, %c0_23], %44 {strides = array<i32>} : memref<1x128xf32, #tpu.memory_space<vmem>>, vector<1x128xf32>,
    } else {
    }
    return
  }
  func.func @transform_0(%arg0: i32, %arg1: i32) -> i32 {
    %c0_i32 = arith.constant 0 : i32
    %c0_i32_0 = arith.constant 0 : i32
    return %c0_i32 : i32
  }
  func.func @transform_1(%arg0: i32, %arg1: i32) -> i32 {
    %c0_i32 = arith.constant 0 : i32
    %c0_i32_0 = arith.constant 0 : i32
    return %c0_i32 : i32
  }
  func.func @transform_2(%arg0: i32, %arg1: i32) -> (i32, i32) {
    %c0_i32 = arith.constant 0 : i32
    return %arg1, %arg0 : i32, i32
  }
  func.func @transform_3(%arg0: i32, %arg1: i32) -> (i32, i32) {
    %c0_i32 = arith.constant 0 : i32
    %c0_i32_0 = arith.constant 0 : i32
    return %c0_i32, %arg0 : i32, i32
  }
}

</mosaic_0001>

<llo_original>
// kernel: tpu_custom_call.1
$region0: #{tpu_custom_call.1}
  #allocation0 [shape = 'u32[]', space=smem, size = 0x4, offset = 0x4, fixed_abs, tag = 'smem constant byte address 0x4 - core index']
  #allocation1 [shape = 'u32[72,128]{1,0:T(1,128)}', space=vmem, size = 0x9000, scoped, tag = 'internal scratch']
  #allocation2 [shape = 'f32[1,128]{1,0:T(1,128)}', space=vmem, size = 0x200, scoped, tag = 'scratch operand']
  #allocation3 [shape = 'f32[1,128]{1,0:T(1,128)}', space=vmem, size = 0x200, scoped, tag = 'scratch operand']
  #allocation4 [shape = 's32[1]{0:T(128)S(6)}', space=smem, size = 0x200, scoped, tag = 'scoped memory for tpu_custom_call.1']
  %s0 = inlined_call_operand.vmem [shape: f32[3], index: 0, kind: input, shape index: {}]
  %s1 = inlined_call_operand.<no memory space> [shape: s32[1], index: 1, kind: input, shape index: {}]
  %s2 = inlined_call_operand.hbm [shape: f32[16,128], index: 2, kind: input, shape index: {}]
  %s3 = inlined_call_operand.hbm [shape: f32[1,128], index: 3, kind: output, shape index: {}]
  %s4 = sld [smem:[#allocation0]]
  $region38: #{tpu_custom_call.1} parent=0
    _
  %s6 = ssub.s32 1, %s4
  %s7 = scalar_select 0, %s6, %s4
  %8 = sst [smem:[#allocation4]] %s1
  $region1: #{tpu_custom_call.1} parent=0
    #allocation5 [shape = 'u8[512]{0}', space=smem, size = 0x200, scoped, tag = 'input window, operand 0, single buffered']
    #allocation6 [shape = 's32[1]{0}', space=sflag, size = 0x4, scoped, tag = 'scoped memory for tpu_custom_call.1']
    #allocation7 [shape = 's32[1]{0}', space=sflag, size = 0x4, scoped, tag = 'scoped memory for tpu_custom_call.1']
    #allocation8 [shape = 's32[1]{0}', space=sflag, size = 0x4, scoped, tag = 'scoped memory for tpu_custom_call.1']
    #allocation9 [shape = 'u8[8192]{0}', space=vmem, size = 0x2000, scoped, tag = 'input window, operand 2, single buffered']
    #allocation10 [shape = 'u8[512]{0}', space=vmem, size = 0x400, scoped, tag = 'output window, operand 0, single buffered']
    %9 = vsyncpa [#allocation8], 0
    %10 = vsyncpa [#allocation6], 0
    %11 = vsyncpa [#allocation7], 0
    // Predicated region
    $region2: #{tpu_custom_call.1} parent=1 // pred_check
      _
    $region3: #{tpu_custom_call.1} parent=1 // pred_check_branch
      %13 = sbr.rel (0) target = $region5
    $region4: #{tpu_custom_call.1} parent=1 // pred_region
      %15 = vsyncadd [#allocation8], 0
      %s17 = sshll.u32 %s0, 4
      %s18 = int_to_ptr.vmem [resolvable:$true] %s17
      %20 = dma.vmem_to_smem %s18, 16, [#allocation5], [#allocation8]
    $region5: #{tpu_custom_call.1} parent=1 // pred_fallthru
      _
    // Predicated region
    $region6: #{tpu_custom_call.1} parent=1 // pred_check
      _
    $region7: #{tpu_custom_call.1} parent=1 // pred_check_branch
      %22 = sbr.rel (0) target = $region9
    $region8: #{tpu_custom_call.1} parent=1 // pred_region
      _
    $region9: #{tpu_custom_call.1} parent=1 // pred_fallthru
      _
    // Predicated region
    $region10: #{tpu_custom_call.1} parent=1 // pred_check
      _
    $region11: #{tpu_custom_call.1} parent=1 // pred_check_branch
      %24 = sbr.rel (0) target = $region13
    $region12: #{tpu_custom_call.1} parent=1 // pred_region
      %26 = vsyncadd [#allocation6], 0
      %s27 = sshll.u32 %s2, 4
      %s28 = int_to_ptr.hbm [resolvable:$true] %s27
      %s29 = sshll.u32 [#allocation9], 4
      %s30 = int_to_ptr.vmem [resolvable:$true] %s29
      %35 = dma.hbm_to_vmem [thread:$0]  %s28, 256, %s30, [#allocation6], 128, 128, 8
    $region13: #{tpu_custom_call.1} parent=1 // pred_fallthru
      _
    // Predicated region
    $region14: #{tpu_custom_call.1} parent=1 // pred_check
      _
    $region15: #{tpu_custom_call.1} parent=1 // pred_check_branch
      %37 = sbr.rel (0) target = $region17
    $region16: #{tpu_custom_call.1} parent=1 // pred_region
      %39 = dma.done [#allocation8], 16
    $region17: #{tpu_custom_call.1} parent=1 // pred_fallthru
      _
    // Predicated region
    $region18: #{tpu_custom_call.1} parent=1 // pred_check
      _
    $region19: #{tpu_custom_call.1} parent=1 // pred_check_branch
      %41 = sbr.rel (0) target = $region21
    $region20: #{tpu_custom_call.1} parent=1 // pred_region
      %43 = dma.done [#allocation6], 256
    $region21: #{tpu_custom_call.1} parent=1 // pred_fallthru
      _
    %44 = sfence
    %p45 = scmp.eq.s32.totalorder 0, 0
    // Predicated region
    $region22: #{tpu_custom_call.1} parent=1 // pred_check
      %p46 = pneg %p45
    $region23: #{tpu_custom_call.1} parent=1 // pred_check_branch
      %48 = sbr.rel (%p46) target = $region25
    $region24: #{tpu_custom_call.1} parent=1 // pred_region
      %49 = vst [vmem:[#allocation2] sm:$0x1] 0.0
      %50 = vst [vmem:[#allocation3] sm:$0x1] -inf
    $region25: #{tpu_custom_call.1} parent=1 // pred_fallthru
      _
    %v51 = vld [vmem:[#allocation9] sm:$0xff]
    %v52 = vld [vmem:[#allocation9 + $0x8] sm:$0xff]
    %s53 = sld [smem:[#allocation4]]
    %s54 = smul.u32 0, 16
    %v55 = vlaneseq
    %v56 = vshrl.u32 %v55, 7
    %v57 = vadd.s32 %v56, 8
    %v58 = vstv %s54
    %v59 = vadd.s32 %v58, %v56
    %v60 = vadd.s32 %v58, %v57
    %v61 = vstv %s53
    %vm62 = vcmp.lt.s32.totalorder %v59, %v61
    %vm63 = vcmp.lt.s32.totalorder %v60, %v61
    %v64 = vld [vmem:[#allocation2] sm:$0x1]
    %v65 = vsel %vm62, %v51, 0.0
    %v66 = vsel %vm63, %v52, 0.0
    %v67 = vadd.f32 %v65, %v66
    %v68 = vrot.slane %v67, 4
    %v69 = vadd.f32 %v67, %v68
    %v70 = vrot.slane %v69, 2
    %v71 = vadd.f32 %v69, %v70
    %v72 = vrot.slane %v71, 1
    %v73 = vadd.f32 %v71, %v72
    %v74 = vadd.f32 %v64, %v73
    %75 = vst [vmem:[#allocation2] sm:$0x1] %v74
    %v76 = vld [vmem:[#allocation3] sm:$0x1]
    %v77 = vsel %vm62, %v51, -inf
    %v78 = vsel %vm63, %v52, -inf
    %v79 = vmax.f32 %v77, %v78
    %v80 = vrot.slane %v79, 4
    %v81 = vmax.f32 %v79, %v80
    %v82 = vrot.slane %v81, 2
    %v83 = vmax.f32 %v81, %v82
    %v84 = vrot.slane %v83, 1
    %v85 = vmax.f32 %v83, %v84
    %v86 = vmax.f32 %v76, %v85
    %87 = vst [vmem:[#allocation3] sm:$0x1] %v86
    // Predicated region
    $region26: #{tpu_custom_call.1} parent=1 // pred_check
      %p88 = pneg %p45
    $region27: #{tpu_custom_call.1} parent=1 // pred_check_branch
      %90 = sbr.rel (%p88) target = $region29
    $region28: #{tpu_custom_call.1} parent=1 // pred_region
      %v91 = vld [vmem:[#allocation2] sm:$0x1]
      %s92 = scvt.s32.f32 %s53
      %v93 = vstv %s92
      %v94 = vrcp.pop %v93
      %v95 = vmul.f32 %v93, %v94
      %v96 = vsub.f32 1.0, %v95
      %v97 = vmul.f32 %v94, %v96
      %v98 = vadd.f32 %v94, %v97
      %vm99 = vweird.f32 %v93
      %vm100 = vweird.f32 %v94
      %vm101 = vmor %vm99, %vm100
      %v102 = vsel %vm101, %v94, %v98
      %v103 = vand.u32 2147483647, %v93
      %vm104 = vcmp.eq.f32.partialorder %v103, 8.507059e+37
      %v105 = vand.u32 %v93, 2147483648
      %v106 = vor.u32 1.1754944e-38, %v105
      %v107 = vsel %vm104, %v106, %v102
      %s108 = vtos %v107
      %v109 = vstv %s108
      %v110 = vmul.f32 %v91, %v109
      %s111 = sld [smem:[#allocation5]]
      %v112 = vstv %s111
      %v113 = vmul.f32 %v112, %v91
      %s114 = sld [smem:[#allocation5 + $0x1]]
      %v115 = vstv %s114
      %v116 = vmul.f32 %v115, %v110
      %v117 = vadd.f32 %v113, %v116
      %s118 = sld [smem:[#allocation5 + $0x2]]
      %v119 = vld [vmem:[#allocation3] sm:$0x1]
      %v120 = vstv %s118
      %v121 = vmul.f32 %v120, %v119
      %v122 = vadd.f32 %v117, %v121
      %123 = vst [vmem:[#allocation10] sm:$0x1] %v122
    $region29: #{tpu_custom_call.1} parent=1 // pred_fallthru
      _
    // Predicated region
    $region30: #{tpu_custom_call.1} parent=1 // pred_check
      _
    $region31: #{tpu_custom_call.1} parent=1 // pred_check_branch
      %125 = sbr.rel (0) target = $region33
    $region32: #{tpu_custom_call.1} parent=1 // pred_region
      %127 = vsyncadd [#allocation7], 0
      %s129 = sshll.u32 [#allocation10], 4
      %s130 = int_to_ptr.vmem [resolvable:$true] %s129
      %s131 = sshll.u32 %s3, 4
      %s132 = int_to_ptr.hbm [resolvable:$true] %s131
      %134 = dma.vmem_to_hbm [thread:$0]  %s130, 16, %s132, [#allocation7]
    $region33: #{tpu_custom_call.1} parent=1 // pred_fallthru
      _
    // Predicated region
    $region34: #{tpu_custom_call.1} parent=1 // pred_check
      _
    $region35: #{tpu_custom_call.1} parent=1 // pred_check_branch
      %136 = sbr.rel (0) target = $region37
    $region36: #{tpu_custom_call.1} parent=1 // pred_region
      %138 = dma.done [#allocation7], 16
    $region37: #{tpu_custom_call.1} parent=1 // pred_fallthru
      _
    %139 = vsyncpa [#allocation6], 1
    %140 = vsyncpa [#allocation7], 1
    %141 = vsyncpa [#allocation8], 1

</llo_original>
